<compile_context>
chip_gen: v7x
topology: tpu7x:2x2x1
jax: 0.10.0
libtpu: 0.0.40
codegen_flags: <defaults>
</compile_context>

<pallas_src>
import functools
import math

import jax
import jax.numpy as jnp
from jax.experimental import pallas as pl
from jax.experimental.pallas import tpu as pltpu

_VMEM_LIMIT = 32 * 1024 * 1024  # explicit scoped-VMEM budget; safe on v5e/v6e/v7x


# ----------------------------- Pallas kernels ------------------------------

def _linear_kernel(x_ref, w_ref, b_ref, o_ref):
    # y = x @ W + b ; bf16 MXU operands, f32 accumulation, bias add in f32.
    acc = jnp.dot(x_ref[...].astype(jnp.bfloat16),
                  w_ref[...].astype(jnp.bfloat16),
                  preferred_element_type=jnp.float32)
    o_ref[...] = (acc + b_ref[...]).astype(o_ref.dtype)


def _flash_mha_out_proj_kernel(q_ref, k_ref, v_ref, mask_ref, wo_ref, bo_ref, o_ref,
                               m_sc, l_sc, acc_sc, *, scale):
    # q (H, tq, E) bf16 ; k (H, tk, E) bf16 ; v (H, tk, D) bf16 ; mask (tq, tk) int8
    # Scratch: m/l (H, tq, 1) f32, acc (H, tq, D) f32. Output (tq, d_model) f32.
    ki = pl.program_id(2)

    @pl.when(ki == 0)
    def _init():
        m_sc[...] = jnp.full(m_sc.shape, -jnp.inf, m_sc.dtype)
        l_sc[...] = jnp.zeros(l_sc.shape, l_sc.dtype)
        acc_sc[...] = jnp.zeros(acc_sc.shape, acc_sc.dtype)

    # Fold the softmax scale into q (H*tq*E elements instead of H*tq*S on the scores).
    q = (q_ref[...] * scale).astype(jnp.bfloat16)
    k = k_ref[...]
    v = v_ref[...]
    masked = (mask_ref[...] > 0)[None, :, :]            # (1, tq, tk), shared by all heads

    # Head-batched QK^T on the MXU with f32 accumulation.
    s = jnp.einsum("hqe,hke->hqk", q, k, preferred_element_type=jnp.float32)
    s = jnp.where(masked, jnp.float32(-10000.0), s)     # matches torch masked_fill

    # Online softmax; elementwise math kept in f32 (v5e-friendly).
    m_prev = m_sc[...]
    m_new = jnp.maximum(m_prev, jnp.max(s, axis=-1, keepdims=True))
    alpha = jnp.exp(m_prev - m_new)
    p = jnp.exp(s - m_new)
    l_sc[...] = alpha * l_sc[...] + jnp.sum(p, axis=-1, keepdims=True)
    acc_sc[...] = alpha * acc_sc[...] + jnp.einsum(
        "hqk,hkd->hqd", p.astype(jnp.bfloat16), v,
        preferred_element_type=jnp.float32)
    m_sc[...] = m_new

    @pl.when(ki == pl.num_programs(2) - 1)
    def _epilogue():
        ctx = acc_sc[...] * pl.reciprocal(l_sc[...], approx=True)   # (H, tq, D) f32
        h, tq, d = ctx.shape
        # One small in-kernel relayout to a lane-dense (tq, H*D) slab (no per-head
        # slices / concat, no per-head masked stores).
        ctx = jnp.transpose(ctx, (1, 0, 2)).reshape(tq, h * d)
        # Fused output projection: Wo is VMEM-resident; saves the (B, L, H*D) HBM
        # round trip of a separate projection call.
        y = jnp.dot(ctx.astype(jnp.bfloat16), wo_ref[...],
                    preferred_element_type=jnp.float32) + bo_ref[...]
        o_ref[...] = y.astype(o_ref.dtype)


# ------------------------------ JAX wrappers --------------------------------

def pallas_linear(x, w, b, *, out_dtype=None, tile_m=512, tile_n=512):
    """x: (M, d_in), w: (d_in, d_out), b: (1, d_out) -> (M, d_out).

    Grid = (d_out tiles, row tiles): the weight block index is constant over the inner
    row loop, so the (d_in, tn) weight stays VMEM-resident while activations stream.
    """
    M, d_in = x.shape
    d_out = w.shape[1]
    out_dtype = out_dtype or x.dtype
    tm = M if M <= tile_m else tile_m
    tn = d_out if d_out <= tile_n else tile_n
    grid = (pl.cdiv(d_out, tn), pl.cdiv(M, tm))
    return pl.pallas_call(
        _linear_kernel,
        out_shape=jax.ShapeDtypeStruct((M, d_out), out_dtype),
        grid=grid,
        in_specs=[
            pl.BlockSpec((tm, d_in), lambda j, i: (i, 0)),   # activation row tile
            pl.BlockSpec((d_in, tn), lambda j, i: (0, j)),   # weight column tile (resident)
            pl.BlockSpec((1, tn), lambda j, i: (0, j)),      # bias tile
        ],
        out_specs=pl.BlockSpec((tm, tn), lambda j, i: (i, j)),
        compiler_params=pltpu.CompilerParams(
            dimension_semantics=("parallel", "parallel"),
            vmem_limit_bytes=_VMEM_LIMIT),
    )(x, w, b)


def _pick_tile(total, tile):
    # Use the requested tile only when it divides the axis; otherwise take the full axis.
    return tile if (total > tile and total % tile == 0) else total


def pallas_mha_out_proj(q4, k4, v4, mask_i8, wo, bo, *, scale, tile_q=128, tile_k=128):
    """q4/k4: (B,H,T,E) bf16, v4: (B,H,S,D) bf16, mask: (B,L,S) int8,
    wo: (H*D, d_model) bf16, bo: (1, d_model) f32  ->  (B, L, d_model) f32."""
    B, H, L, E = q4.shape
    S, D = v4.shape[2], v4.shape[3]
    d_model = wo.shape[1]
    tq = _pick_tile(L, tile_q)   # v5e note: prefer multiples of 128 for the matmul M dim
    tk = _pick_tile(S, tile_k)
    grid = (B, L // tq, S // tk)
    return pl.pallas_call(
        functools.partial(_flash_mha_out_proj_kernel, scale=scale),
        out_shape=jax.ShapeDtypeStruct((B, L, d_model), jnp.float32),
        grid=grid,
        in_specs=[
            pl.BlockSpec((None, H, tq, E), lambda b, qi, ki: (b, 0, qi, 0)),  # q tile
            pl.BlockSpec((None, H, tk, E), lambda b, qi, ki: (b, 0, ki, 0)),  # k chunk
            pl.BlockSpec((None, H, tk, D), lambda b, qi, ki: (b, 0, ki, 0)),  # v chunk
            pl.BlockSpec((None, tq, tk), lambda b, qi, ki: (b, qi, ki)),      # int8 mask
            pl.BlockSpec((H * D, d_model), lambda b, qi, ki: (0, 0)),         # Wo (resident)
            pl.BlockSpec((1, d_model), lambda b, qi, ki: (0, 0)),             # bo
        ],
        out_specs=pl.BlockSpec((None, tq, d_model), lambda b, qi, ki: (b, qi, 0)),
        scratch_shapes=[
            pltpu.VMEM((H, tq, 1), jnp.float32),   # running max
            pltpu.VMEM((H, tq, 1), jnp.float32),   # running denom
            pltpu.VMEM((H, tq, D), jnp.float32),   # running numerator
        ],
        compiler_params=pltpu.CompilerParams(
            dimension_semantics=("parallel", "parallel", "arbitrary"),
            vmem_limit_bytes=_VMEM_LIMIT),
    )(q4, k4, v4, mask_i8, wo, bo)


def full_attention_layer(params, queries, keys, values, attn_mask, n_heads):
    """Equivalent of FullAttentionLayer.forward (eval mode).

    queries: (B, L, d_model), keys/values: (B, S, d_model), attn_mask: (B, L, S) bool.
    """
    B, L, d_model = queries.shape
    _, S, _ = keys.shape
    H = n_heads
    d_k = params["wq"].shape[1] // H
    d_v = params["wv"].shape[1] // H

    to_bf16 = lambda a: a.astype(jnp.bfloat16)   # halve weight DMA bytes / VMEM footprint

    q = pallas_linear(queries.reshape(B * L, d_model), to_bf16(params["wq"]),
                      params["bq"], out_dtype=jnp.bfloat16)
    k = pallas_linear(keys.reshape(B * S, d_model), to_bf16(params["wk"]),
                      params["bk"], out_dtype=jnp.bfloat16)
    v = pallas_linear(values.reshape(B * S, d_model), to_bf16(params["wv"]),
                      params["bv"], out_dtype=jnp.bfloat16)

    # Head-batched (B, H, T, E) layout — one-time layout plumbing in XLA so the attention
    # kernel does pure batched matmuls (no per-head lane slices, no in-kernel concat).
    q4 = q.reshape(B, L, H, d_k).transpose(0, 2, 1, 3)
    k4 = k.reshape(B, S, H, d_k).transpose(0, 2, 1, 3)
    v4 = v.reshape(B, S, H, d_v).transpose(0, 2, 1, 3)

    scale = 1.0 / math.sqrt(d_k)
    mask_i8 = attn_mask.astype(jnp.int8)         # 1 byte/elem instead of int32

    return pallas_mha_out_proj(q4, k4, v4, mask_i8,
                               to_bf16(params["wo"]), params["bo"], scale=scale)


# ------------------------------ reference (plain JAX, f32) -------------------

def reference_full_attention_layer(params, queries, keys, values, attn_mask, n_heads):
    B, L, d_model = queries.shape
    _, S, _ = keys.shape
    H = n_heads
    q = (queries.reshape(B * L, d_model) @ params["wq"] + params["bq"]).reshape(B, L, H, -1)
    k = (keys.reshape(B * S, d_model) @ params["wk"] + params["bk"]).reshape(B, S, H, -1)
    v = (values.reshape(B * S, d_model) @ params["wv"] + params["bv"]).reshape(B, S, H, -1)
    E = q.shape[-1]
    scale = 1.0 / math.sqrt(E)
    scores = jnp.einsum("blhe,bshe->bhls", q, k) * scale
    scores = jnp.where(attn_mask[:, None, :, :], -10000.0, scores)
    A = jax.nn.softmax(scores, axis=-1)
    V = jnp.einsum("bhls,bshd->blhd", A, v)
    out = V.reshape(B * L, -1) @ params["wo"] + params["bo"]
    return out.reshape(B, L, d_model)


# ------------------------------------ main -----------------------------------

if __name__ == "__main__":
    B, L, S = 2, 8, 8
    d_model, n_heads = 32, 4
    d_keys = d_model // n_heads
    d_values = d_model // n_heads

    key = jax.random.PRNGKey(0)
    ks = jax.random.split(key, 12)

    def init_w(k, shape):
        return jax.random.normal(k, shape, jnp.float32) * 0.1

    params = {
        "wq": init_w(ks[0], (d_model, d_keys * n_heads)),
        "bq": init_w(ks[1], (1, d_keys * n_heads)),
        "wk": init_w(ks[2], (d_model, d_keys * n_heads)),
        "bk": init_w(ks[3], (1, d_keys * n_heads)),
        "wv": init_w(ks[4], (d_model, d_values * n_heads)),
        "bv": init_w(ks[5], (1, d_values * n_heads)),
        "wo": init_w(ks[6], (d_values * n_heads, d_model)),
        "bo": init_w(ks[7], (1, d_model)),
    }

    queries = jax.random.normal(ks[8], (B, L, d_model), jnp.float32)
    keys_in = jax.random.normal(ks[9], (B, S, d_model), jnp.float32)
    values_in = jax.random.normal(ks[10], (B, S, d_model), jnp.float32)
    # causal mask: True means "masked out" (matches torch masked_fill semantics)
    attn_mask = jnp.arange(S)[None, :] > jnp.arange(L)[:, None]
    attn_mask = jnp.broadcast_to(attn_mask, (B, L, S))

    out = full_attention_layer(params, queries, keys_in, values_in, attn_mask, n_heads)
    out = jax.block_until_ready(out)

    ref = reference_full_attention_layer(params, queries, keys_in, values_in, attn_mask, n_heads)
    assert out.shape == (B, L, d_model)
    # Tolerance re-derived for bf16 MXU operands (≈0.4% relative rounding per cast, four
    # matmul stages) stacked with the EUP approximate reciprocal in the softmax denominator;
    # observed worst-case error is ~1e-2, so 3e-2 gives comfortable margin vs the f32 reference.
    assert jnp.allclose(out, ref, atol=3e-2, rtol=3e-2), "mismatch vs reference"

    print("KERNEL_OK")
</pallas_src>

<mosaic_0001>
module attributes {stable_mosaic.version = 11 : i64} {
  func.func @_linear_kernel(%arg0: i32, %arg1: i32, %arg2: memref<16x32xf32, #tpu.memory_space<vmem>>, %arg3: memref<32x32xbf16, #tpu.memory_space<vmem>>, %arg4: memref<1x32xf32, #tpu.memory_space<vmem>>, %arg5: memref<16x32xbf16, #tpu.memory_space<vmem>>) attributes {dimension_semantics = [#tpu.dimension_semantics<parallel>, #tpu.dimension_semantics<parallel>], iteration_bounds = array<i64: 1, 1>, scalar_prefetch = 0 : i64, scratch_operands = 0 : i64, tpu.core_type = #tpu.core_type<tc>, window_params = [{transform_indices = @transform_0, window_bounds = array<i64: 16, 32>}, {transform_indices = @transform_1, window_bounds = array<i64: 32, 32>}, {transform_indices = @transform_2, window_bounds = array<i64: 1, 32>}, {transform_indices = @transform_3, window_bounds = array<i64: 16, 32>}]} {
    %c0 = arith.constant 0 : index
    %c0_0 = arith.constant 0 : index
    %0 = vector.load %arg2[%c0, %c0_0] : memref<16x32xf32, #tpu.memory_space<vmem>>, vector<16x32xf32>
    %1 = arith.truncf %0 : vector<16x32xf32> to vector<16x32xbf16>
    %c0_1 = arith.constant 0 : index
    %c0_2 = arith.constant 0 : index
    %2 = vector.load %arg3[%c0_1, %c0_2] : memref<32x32xbf16, #tpu.memory_space<vmem>>, vector<32x32xbf16>
    %cst = arith.constant dense<0.000000e+00> : vector<16x32xf32>
    %3 = tpu.matmul %1, %2, %cst {dimension_numbers = #tpu.dot_dimension_numbers<[1], [0], [0], [1], [0, 0, 1, 1], [], []>} : vector<16x32xbf16>, vector<32x32xbf16>, vector<16x32xf32> -> vector<16x32xf32>
    %c0_3 = arith.constant 0 : index
    %c0_4 = arith.constant 0 : index
    %4 = vector.load %arg4[%c0_3, %c0_4] : memref<1x32xf32, #tpu.memory_space<vmem>>, vector<1x32xf32>
    %5 = vector.broadcast %4 : vector<1x32xf32> to vector<16x32xf32>
    %6 = arith.addf %3, %5 : vector<16x32xf32>
    %7 = arith.truncf %6 : vector<16x32xf32> to vector<16x32xbf16>
    %c0_5 = arith.constant 0 : index
    %c0_6 = arith.constant 0 : index
    %8 = vector.load %arg5[%c0_5, %c0_6] : memref<16x32xbf16, #tpu.memory_space<vmem>>, vector<16x32xbf16>
    tpu.vector_store %arg5[%c0_5, %c0_6], %7 {strides = array<i32>} : memref<16x32xbf16, #tpu.memory_space<vmem>>, vector<16x32xbf16>,
    return
  }
  func.func @transform_0(%arg0: i32, %arg1: i32) -> (i32, i32) {
    %c0_i32 = arith.constant 0 : i32
    %c0_i32_0 = arith.constant 0 : i32
    return %arg1, %c0_i32 : i32, i32
  }
  func.func @transform_1(%arg0: i32, %arg1: i32) -> (i32, i32) {
    %c0_i32 = arith.constant 0 : i32
    %c0_i32_0 = arith.constant 0 : i32
    return %c0_i32, %arg0 : i32, i32
  }
  func.func @transform_2(%arg0: i32, %arg1: i32) -> (i32, i32) {
    %c0_i32 = arith.constant 0 : i32
    %c0_i32_0 = arith.constant 0 : i32
    return %c0_i32, %arg0 : i32, i32
  }
  func.func @transform_3(%arg0: i32, %arg1: i32) -> (i32, i32) {
    %c0_i32 = arith.constant 0 : i32
    return %arg1, %arg0 : i32, i32
  }
}

</mosaic_0001>

<llo_original>
// kernel: tpu_custom_call.1
$region0: #{tpu_custom_call.1}
  #allocation0 [shape = 'u32[]', space=smem, size = 0x4, offset = 0x4, fixed_abs, tag = 'smem constant byte address 0x4 - core index']
  #allocation1 [shape = 'u32[144,128]{1,0:T(1,128)}', space=vmem, size = 0x12000, scoped, tag = 'internal scratch']
  %s0 = inlined_call_operand.hbm [shape: f32[16,32], index: 0, kind: input, shape index: {}]
  %s1 = inlined_call_operand.hbm [shape: bf16[32,32], index: 1, kind: input, shape index: {}]
  %s2 = inlined_call_operand.vmem [shape: f32[1,32], index: 2, kind: input, shape index: {}]
  %s3 = inlined_call_operand.hbm [shape: bf16[16,32], index: 3, kind: output, shape index: {}]
  %s4 = sld [smem:[#allocation0]]
  $region30: #{tpu_custom_call.1} parent=0
    _
  %s6 = ssub.s32 1, %s4
  %s7 = scalar_select 0, %s6, %s4
  $region1: #{tpu_custom_call.1} parent=0
    #allocation2 [shape = 'u8[8192]{0}', space=vmem, size = 0x2000, scoped, tag = 'input window, operand 0, single buffered']
    #allocation3 [shape = 's32[1]{0}', space=sflag, size = 0x4, scoped, tag = 'scoped memory for tpu_custom_call.1']
    #allocation4 [shape = 's32[1]{0}', space=sflag, size = 0x4, scoped, tag = 'scoped memory for tpu_custom_call.1']
    #allocation5 [shape = 'u8[8192]{0}', space=vmem, size = 0x2000, scoped, tag = 'input window, operand 1, single buffered']
    #allocation6 [shape = 's32[1]{0}', space=sflag, size = 0x4, scoped, tag = 'scoped memory for tpu_custom_call.1']
    #allocation7 [shape = 'u8[4096]{0}', space=vmem, size = 0x1000, scoped, tag = 'output window, operand 0, single buffered']
    %8 = vsyncpa [#allocation3], 0
    %9 = vsyncpa [#allocation6], 0
    %10 = vsyncpa [#allocation4], 0
    // Predicated region
    $region2: #{tpu_custom_call.1} parent=1 // pred_check
      _
    $region3: #{tpu_custom_call.1} parent=1 // pred_check_branch
      %12 = sbr.rel (0) target = $region5
    $region4: #{tpu_custom_call.1} parent=1 // pred_region
      %s14 = ssub.s32 256, 256
      %15 = vsyncadd [#allocation3], %s14
      %s16 = sshll.u32 [#allocation2], 4
      %s17 = int_to_ptr.vmem [resolvable:$true] %s16
      %22 = dma.hbm_to_vmem [thread:$0]  %s0, 256, %s17, [#allocation3], 128, 128, 8
    $region5: #{tpu_custom_call.1} parent=1 // pred_fallthru
      _
    // Predicated region
    $region6: #{tpu_custom_call.1} parent=1 // pred_check
      _
    $region7: #{tpu_custom_call.1} parent=1 // pred_check_branch
      %24 = sbr.rel (0) target = $region9
    $region8: #{tpu_custom_call.1} parent=1 // pred_region
      %s26 = ssub.s32 256, 256
      %27 = vsyncadd [#allocation6], %s26
      %s28 = sshll.u32 [#allocation5], 4
      %s29 = int_to_ptr.vmem [resolvable:$true] %s28
      %34 = dma.hbm_to_vmem [thread:$0]  %s1, 256, %s29, [#allocation6], 64, 64, 4
    $region9: #{tpu_custom_call.1} parent=1 // pred_fallthru
      _
    // Predicated region
    $region10: #{tpu_custom_call.1} parent=1 // pred_check
      _
    $region11: #{tpu_custom_call.1} parent=1 // pred_check_branch
      %36 = sbr.rel (0) target = $region13
    $region12: #{tpu_custom_call.1} parent=1 // pred_region
      _
    $region13: #{tpu_custom_call.1} parent=1 // pred_fallthru
      _
    // Predicated region
    $region14: #{tpu_custom_call.1} parent=1 // pred_check
      _
    $region15: #{tpu_custom_call.1} parent=1 // pred_check_branch
      %38 = sbr.rel (0) target = $region17
    $region16: #{tpu_custom_call.1} parent=1 // pred_region
      %39 = dma.done [#allocation3], 256
    $region17: #{tpu_custom_call.1} parent=1 // pred_fallthru
      _
    // Predicated region
    $region18: #{tpu_custom_call.1} parent=1 // pred_check
      _
    $region19: #{tpu_custom_call.1} parent=1 // pred_check_branch
      %41 = sbr.rel (0) target = $region21
    $region20: #{tpu_custom_call.1} parent=1 // pred_region
      %42 = dma.done [#allocation6], 256
    $region21: #{tpu_custom_call.1} parent=1 // pred_fallthru
      _
    %v44 = vld [vmem:[#allocation2] sm:$0xff]
    %v45 = vld [vmem:[#allocation2 + $0x8] sm:$0xff]
    %v46 = vpack.c.bf16 %v45, %v44
    %v47 = vld [vmem:[#allocation5] sm:$0xf]
    %v48 = vld [vmem:[#allocation5 + $0x4] sm:$0xf]
    %v49 = vld [vmem:[#allocation5 + $0x8] sm:$0xf]
    %v50 = vld [vmem:[#allocation5 + $0xc] sm:$0xf]
    %v51 = vld [vmem:[%s2] sm:$0x1]
    %v53 = vlaneseq
    %v54 = vshrl.u32 %v53, 7
    %v55 = vsub.s32 0, %v54
    %v56 = vrot.slane %v51, %v55
    %v62 = vunpack.c.l.b16 %v47
    %v63 = vunpack.c.l.b16 %v48
    %v64 = vunpack.c.l.b16 %v49
    %v65 = vunpack.c.l.b16 %v50
    %v66 = vpack.c.b16 %v63, %v62
    %v67 = vpack.c.b16 %v65, %v64
    %vm70 = vcmask 261120
    %v72 = vsel %vm70, %v46, 0
    %74 = vmatprep.subr.bf16.mxu0 0
    %75 = vmatpush1.bf16.msra.mxu0 %v66
    %76 = vmatprep.subr.bf16.mxu0 0
    %77 = vmatpush1.bf16.msra.mxu0 %v67
    %78 = vmatprep.subr.bf16.mxu0 0
    %79 = vmatpush1.bf16.msra.mxu0 0
    %80 = vmatprep.subr.bf16.mxu0 0
    %81 = vmatpush1.bf16.msra.mxu0 0
    %82 = vmatprep.subr.bf16.mxu0 0
    %83 = vmatpush1.bf16.msra.mxu0 0
    %84 = vmatprep.subr.bf16.mxu0 0
    %85 = vmatpush1.bf16.msra.mxu0 0
    %86 = vmatprep.subr.bf16.mxu0 0
    %87 = vmatpush1.bf16.msra.mxu0 0
    %88 = vmatprep.subr.bf16.mxu0 0
    %89 = vmatpush1.bf16.msra.mxu0 0
    %90 = vmatprep.subr.bf16.mxu0 0
    %91 = vmatpush1.bf16.msra.mxu0 0
    %92 = vmatprep.subr.bf16.mxu0 0
    %93 = vmatpush1.bf16.msra.mxu0 0
    %94 = vmatprep.subr.bf16.mxu0 0
    %95 = vmatpush1.bf16.msra.mxu0 0
    %96 = vmatprep.subr.bf16.mxu0 0
    %97 = vmatpush1.bf16.msra.mxu0 0
    %98 = vmatprep.subr.bf16.mxu0 0
    %99 = vmatpush1.bf16.msra.mxu0 0
    %100 = vmatprep.subr.bf16.mxu0 0
    %101 = vmatpush1.bf16.msra.mxu0 0
    %102 = vmatprep.subr.bf16.mxu0 0
    %103 = vmatpush1.bf16.msra.mxu0 0
    %104 = vmatprep.subr.bf16.mxu0 0
    %105 = vmatpush1.bf16.msra.mxu0 0
    %106 = vmatprep.mubr.bf16.mxu0 0
    %107 = vmatmul.mubr.bf16.gmra.mrb[0].mxu0 %v72
    %v108 = vpop.f32.mrb[0].mxu0
    %v109 = vadd.f32 %v56, %v108
    %v110 = vpop.f32.mrb[0].mxu0
    %v111 = vpop.f32.mrb[0].mxu0
    %v112 = vadd.f32 %v56, %v111
    %v113 = vpop.f32.mrb[0].mxu0
    %114 = vdwg.mxu0
    %v115 = vpack.c.bf16 %v112, %v109
    %v117 = vunpack.c.l.b16 %v115
    %v118 = vunpack.c.h.b16 %v115
    %v119 = vpack.c.b16 %v117, %v117
    %v120 = vpack.c.b16 %v118, %v118
    %vm123 = vcmask 257024
    %124 = vst.msk [vmem:[#allocation7] sm:$0xf] %vm123, %v119
    %125 = vst.msk [vmem:[#allocation7 + $0x4] sm:$0xf] %vm123, %v120
    // Predicated region
    $region22: #{tpu_custom_call.1} parent=1 // pred_check
      _
    $region23: #{tpu_custom_call.1} parent=1 // pred_check_branch
      %127 = sbr.rel (0) target = $region25
    $region24: #{tpu_custom_call.1} parent=1 // pred_region
      %s129 = ssub.s32 128, 128
      %130 = vsyncadd [#allocation4], %s129
      %s131 = sshll.u32 [#allocation7], 4
      %s132 = int_to_ptr.vmem [resolvable:$true] %s131
      %137 = dma.vmem_to_hbm [thread:$0]  %s132, 128, %s3, [#allocation4], 64, 64, 4
    $region25: #{tpu_custom_call.1} parent=1 // pred_fallthru
      _
    // Predicated region
    $region26: #{tpu_custom_call.1} parent=1 // pred_check
      _
    $region27: #{tpu_custom_call.1} parent=1 // pred_check_branch
      %139 = sbr.rel (0) target = $region29
    $region28: #{tpu_custom_call.1} parent=1 // pred_region
      %140 = dma.done [#allocation4], 128
    $region29: #{tpu_custom_call.1} parent=1 // pred_fallthru
      _
    %141 = vsyncpa [#allocation3], 1
    %142 = vsyncpa [#allocation6], 1
    %143 = vsyncpa [#allocation4], 1

</llo_original>
